<compile_context>
chip_gen: v5e
topology: v5e:2x2
jax: 0.10.0
libtpu: 0.0.40
codegen_flags: <defaults>
</compile_context>

<pallas_src>
import functools

import jax
import jax.numpy as jnp
from jax.experimental import pallas as pl
from jax.experimental.pallas import tpu as pltpu

IN_FEATURES = 20
HIDDEN = 256
OUT_FEATURES = 10
TILE_B = 256  # rows per grid step; matches v6e/v7x 256-wide MXU M dimension


def _round_up(x, m):
    return ((x + m - 1) // m) * m


def mlp_kernel(x_ref, w1_ref, b1_ref, w2_ref, b2_ref, o_ref, h_ref):
    # Hidden layer: (TILE_B, K_pad) @ (K_pad, HIDDEN) + (1, HIDDEN), ReLU (MXU + VPU).
    h = jnp.dot(x_ref[...], w1_ref[...], preferred_element_type=jnp.float32)
    h = jnp.maximum(h + b1_ref[...], 0.0)
    # Stage hidden activation through VMEM scratch (keeps spill pattern explicit).
    h_ref[...] = h
    # Output layer: (TILE_B, HIDDEN) @ (HIDDEN, N_pad) + (1, N_pad), lane-dense stores.
    y = jnp.dot(h_ref[...], w2_ref[...], preferred_element_type=jnp.float32)
    o_ref[...] = (y + b2_ref[...]).astype(o_ref.dtype)


@functools.partial(jax.jit, static_argnames=("tile_b",))
def mlp_forward(x, w1, b1, w2, b2, *, tile_b=TILE_B):
    """y = relu(x @ w1 + b1) @ w2 + b2, weights stored (in, out)."""
    B, k_in = x.shape
    hidden = w1.shape[1]
    n_out = w2.shape[1]

    # Padded, TPU-friendly shapes (all pads are exact zeros; sliced off at the end).
    k_pad = _round_up(k_in, 32)          # sublane-friendly K
    n_pad = _round_up(n_out, 128)        # lane-dense output (unmasked stores)
    b_pad = _round_up(max(B, tile_b), tile_b)

    x_p = jnp.pad(x, ((0, b_pad - B), (0, k_pad - k_in)))
    w1_p = jnp.pad(w1, ((0, k_pad - k_in), (0, 0)))
    w2_p = jnp.pad(w2, ((0, 0), (0, n_pad - n_out)))
    b2_p = jnp.pad(b2, ((0, 0), (0, n_pad - n_out)))

    grid = (b_pad // tile_b,)

    out_padded = pl.pallas_call(
        mlp_kernel,
        out_shape=jax.ShapeDtypeStruct((b_pad, n_pad), x.dtype),
        grid_spec=pltpu.PrefetchScalarGridSpec(
            num_scalar_prefetch=0,
            grid=grid,
            in_specs=[
                # x tile streams with the batch grid (double-buffered by Pallas).
                pl.BlockSpec((tile_b, k_pad), lambda i: (i, 0)),
                # Weights / biases: constant block index -> VMEM-resident.
                pl.BlockSpec((k_pad, hidden), lambda i: (0, 0)),
                pl.BlockSpec((1, hidden), lambda i: (0, 0)),
                pl.BlockSpec((hidden, n_pad), lambda i: (0, 0)),
                pl.BlockSpec((1, n_pad), lambda i: (0, 0)),
            ],
            out_specs=pl.BlockSpec((tile_b, n_pad), lambda i: (i, 0)),
            scratch_shapes=[pltpu.VMEM((tile_b, hidden), jnp.float32)],
        ),
        compiler_params=pltpu.CompilerParams(
            dimension_semantics=("parallel",),  # shard batch axis across TCs on v7x
        ),
    )(x_p, w1_p, b1, w2_p, b2_p)

    # Slice away batch / lane padding.
    return out_padded[:B, :n_out]


def init_params(key, in_features=IN_FEATURES, hidden=HIDDEN, out_features=OUT_FEATURES):
    # Deterministic init mimicking nn.Linear's uniform(-1/sqrt(fan_in), 1/sqrt(fan_in)).
    k1, k2, k3, k4 = jax.random.split(key, 4)
    bound1 = 1.0 / jnp.sqrt(in_features)
    bound2 = 1.0 / jnp.sqrt(hidden)
    w1 = jax.random.uniform(k1, (in_features, hidden), jnp.float32, -bound1, bound1)
    b1 = jax.random.uniform(k2, (1, hidden), jnp.float32, -bound1, bound1)
    w2 = jax.random.uniform(k3, (hidden, out_features), jnp.float32, -bound2, bound2)
    b2 = jax.random.uniform(k4, (1, out_features), jnp.float32, -bound2, bound2)
    return w1, b1, w2, b2


if __name__ == "__main__":
    # NOTE: at B=2 this is pure launch overhead (plain jnp would match/beat it);
    # the batch grid is what makes the kernel scale for large B.
    key = jax.random.PRNGKey(0)
    k_x, k_p = jax.random.split(key)
    x = jax.random.uniform(k_x, (2, IN_FEATURES), jnp.float32)  # torch.rand(2, 20) analogue
    w1, b1, w2, b2 = init_params(k_p)

    out = mlp_forward(x, w1, b1, w2, b2)
    jax.block_until_ready(out)

    # Reference check in plain JAX (zero padding is exact, so tight tolerance holds).
    ref = jnp.maximum(x @ w1 + b1, 0.0) @ w2 + b2
    assert out.shape == (2, OUT_FEATURES)
    assert jnp.allclose(out, ref, atol=1e-5, rtol=1e-5)

    # Also exercise a batch larger than one tile to validate the grid path.
    x_big = jax.random.uniform(jax.random.PRNGKey(1), (300, IN_FEATURES), jnp.float32)
    out_big = mlp_forward(x_big, w1, b1, w2, b2)
    jax.block_until_ready(out_big)
    ref_big = jnp.maximum(x_big @ w1 + b1, 0.0) @ w2 + b2
    assert out_big.shape == (300, OUT_FEATURES)
    assert jnp.allclose(out_big, ref_big, atol=1e-4, rtol=1e-5)

    print("KERNEL_OK")
</pallas_src>

<mosaic_0001>
module attributes {stable_mosaic.version = 11 : i64} {
  func.func @mlp_kernel(%arg0: i32, %arg1: memref<256x32xf32, #tpu.memory_space<vmem>>, %arg2: memref<32x256xf32, #tpu.memory_space<vmem>>, %arg3: memref<1x256xf32, #tpu.memory_space<vmem>>, %arg4: memref<256x128xf32, #tpu.memory_space<vmem>>, %arg5: memref<1x128xf32, #tpu.memory_space<vmem>>, %arg6: memref<256x128xf32, #tpu.memory_space<vmem>>, %arg7: memref<256x256xf32, #tpu.memory_space<vmem>>) attributes {dimension_semantics = [#tpu.dimension_semantics<parallel>], iteration_bounds = array<i64: 1>, scalar_prefetch = 0 : i64, scratch_operands = 1 : i64, tpu.core_type = #tpu.core_type<tc>, window_params = [{transform_indices = @transform_0, window_bounds = array<i64: 256, 32>}, {pipeline_mode = #tpu.pipeline_mode<synchronous>, transform_indices = @transform_1, window_bounds = array<i64: 32, 256>}, {pipeline_mode = #tpu.pipeline_mode<synchronous>, transform_indices = @transform_2, window_bounds = array<i64: 1, 256>}, {pipeline_mode = #tpu.pipeline_mode<synchronous>, transform_indices = @transform_3, window_bounds = array<i64: 256, 128>}, {pipeline_mode = #tpu.pipeline_mode<synchronous>, transform_indices = @transform_4, window_bounds = array<i64: 1, 128>}, {transform_indices = @transform_5, window_bounds = array<i64: 256, 128>}]} {
    %c0 = arith.constant 0 : index
    %c0_0 = arith.constant 0 : index
    %0 = vector.load %arg1[%c0, %c0_0] : memref<256x32xf32, #tpu.memory_space<vmem>>, vector<256x32xf32>
    %c0_1 = arith.constant 0 : index
    %c0_2 = arith.constant 0 : index
    %1 = vector.load %arg2[%c0_1, %c0_2] : memref<32x256xf32, #tpu.memory_space<vmem>>, vector<32x256xf32>
    %cst = arith.constant dense<0.000000e+00> : vector<256x256xf32>
    %2 = tpu.matmul %0, %1, %cst {dimension_numbers = #tpu.dot_dimension_numbers<[1], [0], [0], [1], [0, 0, 1, 1], [], []>} : vector<256x32xf32>, vector<32x256xf32>, vector<256x256xf32> -> vector<256x256xf32>
    %c0_3 = arith.constant 0 : index
    %c0_4 = arith.constant 0 : index
    %3 = vector.load %arg3[%c0_3, %c0_4] : memref<1x256xf32, #tpu.memory_space<vmem>>, vector<1x256xf32>
    %4 = vector.broadcast %3 : vector<1x256xf32> to vector<256x256xf32>
    %5 = arith.addf %2, %4 : vector<256x256xf32>
    %cst_5 = arith.constant 0.000000e+00 : f32
    %6 = vector.broadcast %cst_5 : f32 to vector<256x256xf32>
    %7 = arith.maximumf %5, %6 : vector<256x256xf32>
    %c0_6 = arith.constant 0 : index
    %c0_7 = arith.constant 0 : index
    %8 = vector.load %arg7[%c0_6, %c0_7] : memref<256x256xf32, #tpu.memory_space<vmem>>, vector<256x256xf32>
    tpu.vector_store %arg7[%c0_6, %c0_7], %7 {strides = array<i32>} : memref<256x256xf32, #tpu.memory_space<vmem>>, vector<256x256xf32>,
    %c0_8 = arith.constant 0 : index
    %c0_9 = arith.constant 0 : index
    %9 = vector.load %arg7[%c0_8, %c0_9] : memref<256x256xf32, #tpu.memory_space<vmem>>, vector<256x256xf32>
    %c0_10 = arith.constant 0 : index
    %c0_11 = arith.constant 0 : index
    %10 = vector.load %arg4[%c0_10, %c0_11] : memref<256x128xf32, #tpu.memory_space<vmem>>, vector<256x128xf32>
    %cst_12 = arith.constant dense<0.000000e+00> : vector<256x128xf32>
    %11 = tpu.matmul %9, %10, %cst_12 {dimension_numbers = #tpu.dot_dimension_numbers<[1], [0], [0], [1], [0, 0, 1, 1], [], []>} : vector<256x256xf32>, vector<256x128xf32>, vector<256x128xf32> -> vector<256x128xf32>
    %c0_13 = arith.constant 0 : index
    %c0_14 = arith.constant 0 : index
    %12 = vector.load %arg5[%c0_13, %c0_14] : memref<1x128xf32, #tpu.memory_space<vmem>>, vector<1x128xf32>
    %13 = vector.broadcast %12 : vector<1x128xf32> to vector<256x128xf32>
    %14 = arith.addf %11, %13 : vector<256x128xf32>
    %c0_15 = arith.constant 0 : index
    %c0_16 = arith.constant 0 : index
    %15 = vector.load %arg6[%c0_15, %c0_16] : memref<256x128xf32, #tpu.memory_space<vmem>>, vector<256x128xf32>
    tpu.vector_store %arg6[%c0_15, %c0_16], %14 {strides = array<i32>} : memref<256x128xf32, #tpu.memory_space<vmem>>, vector<256x128xf32>,
    return
  }
  func.func @transform_0(%arg0: i32) -> (i32, i32) {
    %c0_i32 = arith.constant 0 : i32
    %c0_i32_0 = arith.constant 0 : i32
    return %arg0, %c0_i32 : i32, i32
  }
  func.func @transform_1(%arg0: i32) -> (i32, i32) {
    %c0_i32 = arith.constant 0 : i32
    %c0_i32_0 = arith.constant 0 : i32
    %c0_i32_1 = arith.constant 0 : i32
    return %c0_i32, %c0_i32_0 : i32, i32
  }
  func.func @transform_2(%arg0: i32) -> (i32, i32) {
    %c0_i32 = arith.constant 0 : i32
    %c0_i32_0 = arith.constant 0 : i32
    %c0_i32_1 = arith.constant 0 : i32
    return %c0_i32, %c0_i32_0 : i32, i32
  }
  func.func @transform_3(%arg0: i32) -> (i32, i32) {
    %c0_i32 = arith.constant 0 : i32
    %c0_i32_0 = arith.constant 0 : i32
    %c0_i32_1 = arith.constant 0 : i32
    return %c0_i32, %c0_i32_0 : i32, i32
  }
  func.func @transform_4(%arg0: i32) -> (i32, i32) {
    %c0_i32 = arith.constant 0 : i32
    %c0_i32_0 = arith.constant 0 : i32
    %c0_i32_1 = arith.constant 0 : i32
    return %c0_i32, %c0_i32_0 : i32, i32
  }
  func.func @transform_5(%arg0: i32) -> (i32, i32) {
    %c0_i32 = arith.constant 0 : i32
    %c0_i32_0 = arith.constant 0 : i32
    return %arg0, %c0_i32 : i32, i32
  }
}

</mosaic_0001>

<llo_original>
// kernel: mlp_forward.1
$region0: #{mlp_forward.1}
  #allocation0 [shape = 'u32[]', space=smem, size = 0x4, offset = 0x4, fixed_abs, tag = 'smem constant byte address 0x4 - core index']
  #allocation1 [shape = 'u32[72,128]{1,0:T(1,128)}', space=vmem, size = 0x9000, scoped, tag = 'internal scratch']
  #allocation2 [shape = 'f32[256,256]{1,0:T(8,128)}', space=vmem, size = 0x40000, scoped, tag = 'scratch operand']
  %s0 = inlined_call_operand.vmem [shape: f32[256,32], index: 0, kind: input, shape index: {}]
  %s1 = inlined_call_operand.vmem [shape: f32[32,256], index: 1, kind: input, shape index: {}]
  %s2 = inlined_call_operand.vmem [shape: f32[1,256], index: 2, kind: input, shape index: {}]
  %s3 = inlined_call_operand.vmem [shape: f32[256,128], index: 3, kind: input, shape index: {}]
  %s4 = inlined_call_operand.vmem [shape: f32[1,128], index: 4, kind: input, shape index: {}]
  %s5 = inlined_call_operand.vmem [shape: f32[256,128], index: 5, kind: output, shape index: {}]
  %s6 = sld [smem:[#allocation0]]
  $region30: #{mlp_forward.1} parent=0
    _
  %s8 = ssub.s32 1, %s6
  %s9 = scalar_select 0, %s8, %s6
  // Predicated region
  $region2: #{mlp_forward.1} parent=0 // pred_check
    _
  $region3: #{mlp_forward.1} parent=0 // pred_check_branch
    %11 = sbr.rel (0) target = $region5
  $region4: #{mlp_forward.1} parent=0 // pred_region
    _
  $region5: #{mlp_forward.1} parent=0 // pred_fallthru
    _
  // Predicated region
  $region6: #{mlp_forward.1} parent=0 // pred_check
    _
  $region7: #{mlp_forward.1} parent=0 // pred_check_branch
    %13 = sbr.rel (0) target = $region9
  $region8: #{mlp_forward.1} parent=0 // pred_region
    _
  $region9: #{mlp_forward.1} parent=0 // pred_fallthru
    _
  // Predicated region
  $region10: #{mlp_forward.1} parent=0 // pred_check
    _
  $region11: #{mlp_forward.1} parent=0 // pred_check_branch
    %15 = sbr.rel (0) target = $region13
  $region12: #{mlp_forward.1} parent=0 // pred_region
    _
  $region13: #{mlp_forward.1} parent=0 // pred_fallthru
    _
  // Predicated region
  $region14: #{mlp_forward.1} parent=0 // pred_check
    _
  $region15: #{mlp_forward.1} parent=0 // pred_check_branch
    %17 = sbr.rel (0) target = $region17
  $region16: #{mlp_forward.1} parent=0 // pred_region
    _
  $region17: #{mlp_forward.1} parent=0 // pred_fallthru
    _
  // Predicated region
  $region18: #{mlp_forward.1} parent=0 // pred_check
    _
  $region19: #{mlp_forward.1} parent=0 // pred_check_branch
    %19 = sbr.rel (0) target = $region21
  $region20: #{mlp_forward.1} parent=0 // pred_region
    _
  $region21: #{mlp_forward.1} parent=0 // pred_fallthru
    _
  %v20 = vld [vmem:[%s0] sm:$0xff]
  %v21 = vld [vmem:[%s0 + $0x8] sm:$0xff]
  %v22 = vld [vmem:[%s0 + $0x10] sm:$0xff]
  %v23 = vld [vmem:[%s0 + $0x18] sm:$0xff]
  %v24 = vld [vmem:[%s0 + $0x20] sm:$0xff]
  %v25 = vld [vmem:[%s0 + $0x28] sm:$0xff]
  %v26 = vld [vmem:[%s0 + $0x30] sm:$0xff]
  %v27 = vld [vmem:[%s0 + $0x38] sm:$0xff]
  %v28 = vld [vmem:[%s0 + $0x40] sm:$0xff]
  %v29 = vld [vmem:[%s0 + $0x48] sm:$0xff]
  %v30 = vld [vmem:[%s0 + $0x50] sm:$0xff]
  %v31 = vld [vmem:[%s0 + $0x58] sm:$0xff]
  %v32 = vld [vmem:[%s0 + $0x60] sm:$0xff]
  %v33 = vld [vmem:[%s0 + $0x68] sm:$0xff]
  %v34 = vld [vmem:[%s0 + $0x70] sm:$0xff]
  %v35 = vld [vmem:[%s0 + $0x78] sm:$0xff]
  %v36 = vld [vmem:[%s0 + $0x80] sm:$0xff]
  %v37 = vld [vmem:[%s0 + $0x88] sm:$0xff]
  %v38 = vld [vmem:[%s0 + $0x90] sm:$0xff]
  %v39 = vld [vmem:[%s0 + $0x98] sm:$0xff]
  %v40 = vld [vmem:[%s0 + $0xa0] sm:$0xff]
  %v41 = vld [vmem:[%s0 + $0xa8] sm:$0xff]
  %v42 = vld [vmem:[%s0 + $0xb0] sm:$0xff]
  %v43 = vld [vmem:[%s0 + $0xb8] sm:$0xff]
  %v44 = vld [vmem:[%s0 + $0xc0] sm:$0xff]
  %v45 = vld [vmem:[%s0 + $0xc8] sm:$0xff]
  %v46 = vld [vmem:[%s0 + $0xd0] sm:$0xff]
  %v47 = vld [vmem:[%s0 + $0xd8] sm:$0xff]
  %v48 = vld [vmem:[%s0 + $0xe0] sm:$0xff]
  %v49 = vld [vmem:[%s0 + $0xe8] sm:$0xff]
  %v50 = vld [vmem:[%s0 + $0xf0] sm:$0xff]
  %v51 = vld [vmem:[%s0 + $0xf8] sm:$0xff]
  %v52 = vld [vmem:[%s1] sm:$0xff]
  %v53 = vld [vmem:[%s1 + $0x8] sm:$0xff]
  %v54 = vld [vmem:[%s1 + $0x10] sm:$0xff]
  %v55 = vld [vmem:[%s1 + $0x18] sm:$0xff]
  %v56 = vld [vmem:[%s1 + $0x20] sm:$0xff]
  %v57 = vld [vmem:[%s1 + $0x28] sm:$0xff]
  %v58 = vld [vmem:[%s1 + $0x30] sm:$0xff]
  %v59 = vld [vmem:[%s1 + $0x38] sm:$0xff]
  %v60 = vld [vmem:[%s2] sm:$0x3]
  %v62 = vperm.slane %v60, 0
  %v63 = vperm.slane %v60, 1
  %vm66 = vcmask 261120
  %v68 = vsel %vm66, %v20, 0
  %v71 = vsel %vm66, %v21, 0
  %v74 = vsel %vm66, %v22, 0
  %v77 = vsel %vm66, %v23, 0
  %v80 = vsel %vm66, %v24, 0
  %v83 = vsel %vm66, %v25, 0
  %v86 = vsel %vm66, %v26, 0
  %v89 = vsel %vm66, %v27, 0
  %v92 = vsel %vm66, %v28, 0
  %v95 = vsel %vm66, %v29, 0
  %v98 = vsel %vm66, %v30, 0
  %v101 = vsel %vm66, %v31, 0
  %v104 = vsel %vm66, %v32, 0
  %v107 = vsel %vm66, %v33, 0
  %v110 = vsel %vm66, %v34, 0
  %v113 = vsel %vm66, %v35, 0
  %v116 = vsel %vm66, %v36, 0
  %v119 = vsel %vm66, %v37, 0
  %v122 = vsel %vm66, %v38, 0
  %v125 = vsel %vm66, %v39, 0
  %v128 = vsel %vm66, %v40, 0
  %v131 = vsel %vm66, %v41, 0
  %v134 = vsel %vm66, %v42, 0
  %v137 = vsel %vm66, %v43, 0
  %v140 = vsel %vm66, %v44, 0
  %v143 = vsel %vm66, %v45, 0
  %v146 = vsel %vm66, %v46, 0
  %v149 = vsel %vm66, %v47, 0
  %v152 = vsel %vm66, %v48, 0
  %v155 = vsel %vm66, %v49, 0
  %v158 = vsel %vm66, %v50, 0
  %v161 = vsel %vm66, %v51, 0
  %163 = vmatpush.msra.mxu0 0.0
  %164 = vmatpush.msra.mxu0 0.0
  %165 = vmatpush.msra.mxu0 0.0
  %166 = vmatpush.msra.mxu0 0.0
  %167 = vmatpush.msra.mxu0 0.0
  %168 = vmatpush.msra.mxu0 0.0
  %169 = vmatpush.msra.mxu0 0.0
  %170 = vmatpush.msra.mxu0 0.0
  %171 = vmatpush.msra.mxu0 0.0
  %172 = vmatpush.msra.mxu0 0.0
  %173 = vmatpush.msra.mxu0 0.0
  %174 = vmatpush.msra.mxu0 0.0
  %175 = vmatpush.msra.mxu0 %v58
  %176 = vmatpush.msra.mxu0 %v56
  %177 = vmatpush.msra.mxu0 %v54
  %178 = vmatpush.msra.mxu0 %v52
  %179 = vmatmul.f32.gmra.mxu0 %v68
  %v180 = vpop.f32.mrf.mxu0
  %v181 = vadd.f32 %v62, %v180
  %182 = vmatmul.f32.gmra.mxu0 %v71
  %v183 = vpop.f32.mrf.mxu0
  %v184 = vadd.f32 %v62, %v183
  %185 = vmatmul.f32.gmra.mxu0 %v74
  %v186 = vpop.f32.mrf.mxu0
  %v187 = vadd.f32 %v62, %v186
  %188 = vmatmul.f32.gmra.mxu0 %v77
  %v189 = vpop.f32.mrf.mxu0
  %v190 = vadd.f32 %v62, %v189
  %191 = vmatmul.f32.gmra.mxu0 %v80
  %v192 = vpop.f32.mrf.mxu0
  %v193 = vadd.f32 %v62, %v192
  %194 = vmatmul.f32.gmra.mxu0 %v83
  %v195 = vpop.f32.mrf.mxu0
  %v196 = vadd.f32 %v62, %v195
  %197 = vmatmul.f32.gmra.mxu0 %v86
  %v198 = vpop.f32.mrf.mxu0
  %v199 = vadd.f32 %v62, %v198
  %200 = vmatmul.f32.gmra.mxu0 %v89
  %v201 = vpop.f32.mrf.mxu0
  %v202 = vadd.f32 %v62, %v201
  %203 = vmatmul.f32.gmra.mxu0 %v92
  %v204 = vpop.f32.mrf.mxu0
  %v205 = vadd.f32 %v62, %v204
  %206 = vmatmul.f32.gmra.mxu0 %v95
  %v207 = vpop.f32.mrf.mxu0
  %v208 = vadd.f32 %v62, %v207
  %209 = vmatmul.f32.gmra.mxu0 %v98
  %v210 = vpop.f32.mrf.mxu0
  %v211 = vadd.f32 %v62, %v210
  %212 = vmatmul.f32.gmra.mxu0 %v101
  %v213 = vpop.f32.mrf.mxu0
  %v214 = vadd.f32 %v62, %v213
  %215 = vmatmul.f32.gmra.mxu0 %v104
  %v216 = vpop.f32.mrf.mxu0
  %v217 = vadd.f32 %v62, %v216
  %218 = vmatmul.f32.gmra.mxu0 %v107
  %v219 = vpop.f32.mrf.mxu0
  %v220 = vadd.f32 %v62, %v219
  %221 = vmatmul.f32.gmra.mxu0 %v110
  %v222 = vpop.f32.mrf.mxu0
  %v223 = vadd.f32 %v62, %v222
  %224 = vmatmul.f32.gmra.mxu0 %v113
  %v225 = vpop.f32.mrf.mxu0
  %v226 = vadd.f32 %v62, %v225
  %227 = vmatmul.f32.gmra.mxu0 %v116
  %v228 = vpop.f32.mrf.mxu0
  %v229 = vadd.f32 %v62, %v228
  %230 = vmatmul.f32.gmra.mxu0 %v119
  %v231 = vpop.f32.mrf.mxu0
  %v232 = vadd.f32 %v62, %v231
  %233 = vmatmul.f32.gmra.mxu0 %v122
  %v234 = vpop.f32.mrf.mxu0
  %v235 = vadd.f32 %v62, %v234
  %236 = vmatmul.f32.gmra.mxu0 %v125
  %v237 = vpop.f32.mrf.mxu0
  %v238 = vadd.f32 %v62, %v237
  %239 = vmatmul.f32.gmra.mxu0 %v128
  %v240 = vpop.f32.mrf.mxu0
  %v241 = vadd.f32 %v62, %v240
  %242 = vmatmul.f32.gmra.mxu0 %v131
  %v243 = vpop.f32.mrf.mxu0
  %v244 = vadd.f32 %v62, %v243
  %245 = vmatmul.f32.gmra.mxu0 %v134
  %v246 = vpop.f32.mrf.mxu0
  %v247 = vadd.f32 %v62, %v246
  %248 = vmatmul.f32.gmra.mxu0 %v137
  %v249 = vpop.f32.mrf.mxu0
  %v250 = vadd.f32 %v62, %v249
  %251 = vmatmul.f32.gmra.mxu0 %v140
  %v252 = vpop.f32.mrf.mxu0
  %v253 = vadd.f32 %v62, %v252
  %254 = vmatmul.f32.gmra.mxu0 %v143
  %v255 = vpop.f32.mrf.mxu0
  %v256 = vadd.f32 %v62, %v255
  %257 = vmatmul.f32.gmra.mxu0 %v146
  %v258 = vpop.f32.mrf.mxu0
  %v259 = vadd.f32 %v62, %v258
  %260 = vmatmul.f32.gmra.mxu0 %v149
  %v261 = vpop.f32.mrf.mxu0
  %v262 = vadd.f32 %v62, %v261
  %263 = vmatmul.f32.gmra.mxu0 %v152
  %v264 = vpop.f32.mrf.mxu0
  %v265 = vadd.f32 %v62, %v264
  %266 = vmatmul.f32.gmra.mxu0 %v155
  %v267 = vpop.f32.mrf.mxu0
  %v268 = vadd.f32 %v62, %v267
  %269 = vmatmul.f32.gmra.mxu0 %v158
  %v270 = vpop.f32.mrf.mxu0
  %v271 = vadd.f32 %v62, %v270
  %272 = vmatmul.f32.gmra.mxu0 %v161
  %v273 = vpop.f32.mrf.mxu0
  %v274 = vadd.f32 %v62, %v273
  %275 = vdwg.mxu0
  %276 = vmatpush.msra.mxu0 0.0
  %277 = vmatpush.msra.mxu0 0.0
  %278 = vmatpush.msra.mxu0 0.0
  %279 = vmatpush.msra.mxu0 0.0
  %280 = vmatpush.msra.mxu0 0.0
  %281 = vmatpush.msra.mxu0 0.0
  %282 = vmatpush.msra.mxu0 0.0
  %283 = vmatpush.msra.mxu0 0.0
  %284 = vmatpush.msra.mxu0 0.0
  %285 = vmatpush.msra.mxu0 0.0
  %286 = vmatpush.msra.mxu0 0.0
  %287 = vmatpush.msra.mxu0 0.0
  %288 = vmatpush.msra.mxu0 %v59
  %289 = vmatpush.msra.mxu0 %v57
  %290 = vmatpush.msra.mxu0 %v55
  %291 = vmatpush.msra.mxu0 %v53
  %292 = vmatmul.f32.gmra.mxu0 %v68
  %v293 = vpop.f32.mrf.mxu0
  %v294 = vadd.f32 %v63, %v293
  %295 = vmatmul.f32.gmra.mxu0 %v71
  %v296 = vpop.f32.mrf.mxu0
  %v297 = vadd.f32 %v63, %v296
  %298 = vmatmul.f32.gmra.mxu0 %v74
  %v299 = vpop.f32.mrf.mxu0
  %v300 = vadd.f32 %v63, %v299
  %301 = vmatmul.f32.gmra.mxu0 %v77
  %v302 = vpop.f32.mrf.mxu0
  %v303 = vadd.f32 %v63, %v302
  %304 = vmatmul.f32.gmra.mxu0 %v80
  %v305 = vpop.f32.mrf.mxu0
  %v306 = vadd.f32 %v63, %v305
  %307 = vmatmul.f32.gmra.mxu0 %v83
  %v308 = vpop.f32.mrf.mxu0
  %v309 = vadd.f32 %v63, %v308
  %310 = vmatmul.f32.gmra.mxu0 %v86
  %v311 = vpop.f32.mrf.mxu0
  %v312 = vadd.f32 %v63, %v311
  %313 = vmatmul.f32.gmra.mxu0 %v89
  %v314 = vpop.f32.mrf.mxu0
  %v315 = vadd.f32 %v63, %v314
  %316 = vmatmul.f32.gmra.mxu0 %v92
  %v317 = vpop.f32.mrf.mxu0
  %v318 = vadd.f32 %v63, %v317
  %319 = vmatmul.f32.gmra.mxu0 %v95
  %v320 = vpop.f32.mrf.mxu0
  %v321 = vadd.f32 %v63, %v320
  %322 = vmatmul.f32.gmra.mxu0 %v98
  %v323 = vpop.f32.mrf.mxu0
  %v324 = vadd.f32 %v63, %v323
  %325 = vmatmul.f32.gmra.mxu0 %v101
  %v326 = vpop.f32.mrf.mxu0
  %v327 = vadd.f32 %v63, %v326
  %328 = vmatmul.f32.gmra.mxu0 %v104
  %v329 = vpop.f32.mrf.mxu0
  %v330 = vadd.f32 %v63, %v329
  %331 = vmatmul.f32.gmra.mxu0 %v107
  %v332 = vpop.f32.mrf.mxu0
  %v333 = vadd.f32 %v63, %v332
  %334 = vmatmul.f32.gmra.mxu0 %v110
  %v335 = vpop.f32.mrf.mxu0
  %v336 = vadd.f32 %v63, %v335
  %337 = vmatmul.f32.gmra.mxu0 %v113
  %v338 = vpop.f32.mrf.mxu0
  %v339 = vadd.f32 %v63, %v338
  %340 = vmatmul.f32.gmra.mxu0 %v116
  %v341 = vpop.f32.mrf.mxu0
  %v342 = vadd.f32 %v63, %v341
  %343 = vmatmul.f32.gmra.mxu0 %v119
  %v344 = vpop.f32.mrf.mxu0
  %v345 = vadd.f32 %v63, %v344
  %346 = vmatmul.f32.gmra.mxu0 %v122
  %v347 = vpop.f32.mrf.mxu0
  %v348 = vadd.f32 %v63, %v347
  %349 = vmatmul.f32.gmra.mxu0 %v125
  %v350 = vpop.f32.mrf.mxu0
  %v351 = vadd.f32 %v63, %v350
  %352 = vmatmul.f32.gmra.mxu0 %v128
  %v353 = vpop.f32.mrf.mxu0
  %v354 = vadd.f32 %v63, %v353
  %355 = vmatmul.f32.gmra.mxu0 %v131
  %v356 = vpop.f32.mrf.mxu0
  %v357 = vadd.f32 %v63, %v356
  %358 = vmatmul.f32.gmra.mxu0 %v134
  %v359 = vpop.f32.mrf.mxu0
  %v360 = vadd.f32 %v63, %v359
  %361 = vmatmul.f32.gmra.mxu0 %v137
  %v362 = vpop.f32.mrf.mxu0
  %v363 = vadd.f32 %v63, %v362
  %364 = vmatmul.f32.gmra.mxu0 %v140
  %v365 = vpop.f32.mrf.mxu0
  %v366 = vadd.f32 %v63, %v365
  %367 = vmatmul.f32.gmra.mxu0 %v143
  %v368 = vpop.f32.mrf.mxu0
  %v369 = vadd.f32 %v63, %v368
  %370 = vmatmul.f32.gmra.mxu0 %v146
  %v371 = vpop.f32.mrf.mxu0
  %v372 = vadd.f32 %v63, %v371
  %373 = vmatmul.f32.gmra.mxu0 %v149
  %v374 = vpop.f32.mrf.mxu0
  %v375 = vadd.f32 %v63, %v374
  %376 = vmatmul.f32.gmra.mxu0 %v152
  %v377 = vpop.f32.mrf.mxu0
  %v378 = vadd.f32 %v63, %v377
  %379 = vmatmul.f32.gmra.mxu0 %v155
  %v380 = vpop.f32.mrf.mxu0
  %v381 = vadd.f32 %v63, %v380
  %382 = vmatmul.f32.gmra.mxu0 %v158
  %v383 = vpop.f32.mrf.mxu0
  %v384 = vadd.f32 %v63, %v383
  %385 = vmatmul.f32.gmra.mxu0 %v161
  %v386 = vpop.f32.mrf.mxu0
  %v387 = vadd.f32 %v63, %v386
  %388 = vdwg.mxu0
  %v389 = vmax.f32 %v181, 0.0
  %v390 = vmax.f32 %v294, 0.0
  %v391 = vmax.f32 %v184, 0.0
  %v392 = vmax.f32 %v297, 0.0
  %v393 = vmax.f32 %v187, 0.0
  %v394 = vmax.f32 %v300, 0.0
  %v395 = vmax.f32 %v190, 0.0
  %v396 = vmax.f32 %v303, 0.0
  %v397 = vmax.f32 %v193, 0.0
  %v398 = vmax.f32 %v306, 0.0
  %v399 = vmax.f32 %v196, 0.0
  %v400 = vmax.f32 %v309, 0.0
  %v401 = vmax.f32 %v199, 0.0
  %v402 = vmax.f32 %v312, 0.0
  %v403 = vmax.f32 %v202, 0.0
  %v404 = vmax.f32 %v315, 0.0
  %v405 = vmax.f32 %v205, 0.0
  %v406 = vmax.f32 %v318, 0.0
  %v407 = vmax.f32 %v208, 0.0
  %v408 = vmax.f32 %v321, 0.0
  %v409 = vmax.f32 %v211, 0.0
  %v410 = vmax.f32 %v324, 0.0
  %v411 = vmax.f32 %v214, 0.0
  %v412 = vmax.f32 %v327, 0.0
  %v413 = vmax.f32 %v217, 0.0
  %v414 = vmax.f32 %v330, 0.0
  %v415 = vmax.f32 %v220, 0.0
  %v416 = vmax.f32 %v333, 0.0
  %v417 = vmax.f32 %v223, 0.0
  %v418 = vmax.f32 %v336, 0.0
  %v419 = vmax.f32 %v226, 0.0
  %v420 = vmax.f32 %v339, 0.0
  %v421 = vmax.f32 %v229, 0.0
  %v422 = vmax.f32 %v342, 0.0
  %v423 = vmax.f32 %v232, 0.0
  %v424 = vmax.f32 %v345, 0.0
  %v425 = vmax.f32 %v235, 0.0
  %v426 = vmax.f32 %v348, 0.0
  %v427 = vmax.f32 %v238, 0.0
  %v428 = vmax.f32 %v351, 0.0
  %v429 = vmax.f32 %v241, 0.0
  %v430 = vmax.f32 %v354, 0.0
  %v431 = vmax.f32 %v244, 0.0
  %v432 = vmax.f32 %v357, 0.0
  %v433 = vmax.f32 %v247, 0.0
  %v434 = vmax.f32 %v360, 0.0
  %v435 = vmax.f32 %v250, 0.0
  %v436 = vmax.f32 %v363, 0.0
  %v437 = vmax.f32 %v253, 0.0
  %v438 = vmax.f32 %v366, 0.0
  %v439 = vmax.f32 %v256, 0.0
  %v440 = vmax.f32 %v369, 0.0
  %v441 = vmax.f32 %v259, 0.0
  %v442 = vmax.f32 %v372, 0.0
  %v443 = vmax.f32 %v262, 0.0
  %v444 = vmax.f32 %v375, 0.0
  %v445 = vmax.f32 %v265, 0.0
  %v446 = vmax.f32 %v378, 0.0
  %v447 = vmax.f32 %v268, 0.0
  %v448 = vmax.f32 %v381, 0.0
  %v449 = vmax.f32 %v271, 0.0
  %v450 = vmax.f32 %v384, 0.0
  %v451 = vmax.f32 %v274, 0.0
  %v452 = vmax.f32 %v387, 0.0
  %453 = vst [vmem:[#allocation2] sm:$0xff] %v389
  %454 = vst [vmem:[#allocation2 + $0x8] sm:$0xff] %v390
  %455 = vst [vmem:[#allocation2 + $0x10] sm:$0xff] %v391
  %456 = vst [vmem:[#allocation2 + $0x18] sm:$0xff] %v392
  %457 = vst [vmem:[#allocation2 + $0x20] sm:$0xff] %v393
  %458 = vst [vmem:[#allocation2 + $0x28] sm:$0xff] %v394
  %459 = vst [vmem:[#allocation2 + $0x30] sm:$0xff] %v395
  %460 = vst [vmem:[#allocation2 + $0x38] sm:$0xff] %v396
  %461 = vst [vmem:[#allocation2 + $0x40] sm:$0xff] %v397
  %462 = vst [vmem:[#allocation2 + $0x48] sm:$0xff] %v398
  %463 = vst [vmem:[#allocation2 + $0x50] sm:$0xff] %v399
  %464 = vst [vmem:[#allocation2 + $0x58] sm:$0xff] %v400
  %465 = vst [vmem:[#allocation2 + $0x60] sm:$0xff] %v401
  %466 = vst [vmem:[#allocation2 + $0x68] sm:$0xff] %v402
  %467 = vst [vmem:[#allocation2 + $0x70] sm:$0xff] %v403
  %468 = vst [vmem:[#allocation2 + $0x78] sm:$0xff] %v404
  %469 = vst [vmem:[#allocation2 + $0x80] sm:$0xff] %v405
  %470 = vst [vmem:[#allocation2 + $0x88] sm:$0xff] %v406
  %471 = vst [vmem:[#allocation2 + $0x90] sm:$0xff] %v407
  %472 = vst [vmem:[#allocation2 + $0x98] sm:$0xff] %v408
  %473 = vst [vmem:[#allocation2 + $0xa0] sm:$0xff] %v409
  %474 = vst [vmem:[#allocation2 + $0xa8] sm:$0xff] %v410
  %475 = vst [vmem:[#allocation2 + $0xb0] sm:$0xff] %v411
  %476 = vst [vmem:[#allocation2 + $0xb8] sm:$0xff] %v412
  %477 = vst [vmem:[#allocation2 + $0xc0] sm:$0xff] %v413
  %478 = vst [vmem:[#allocation2 + $0xc8] sm:$0xff] %v414
  %479 = vst [vmem:[#allocation2 + $0xd0] sm:$0xff] %v415
  %480 = vst [vmem:[#allocation2 + $0xd8] sm:$0xff] %v416
  %481 = vst [vmem:[#allocation2 + $0xe0] sm:$0xff] %v417
  %482 = vst [vmem:[#allocation2 + $0xe8] sm:$0xff] %v418
  %483 = vst [vmem:[#allocation2 + $0xf0] sm:$0xff] %v419
  %484 = vst [vmem:[#allocation2 + $0xf8] sm:$0xff] %v420
  %485 = vst [vmem:[#allocation2 + $0x100] sm:$0xff] %v421
  %486 = vst [vmem:[#allocation2 + $0x108] sm:$0xff] %v422
  %487 = vst [vmem:[#allocation2 + $0x110] sm:$0xff] %v423
  %488 = vst [vmem:[#allocation2 + $0x118] sm:$0xff] %v424
  %489 = vst [vmem:[#allocation2 + $0x120] sm:$0xff] %v425
  %490 = vst [vmem:[#allocation2 + $0x128] sm:$0xff] %v426
  %491 = vst [vmem:[#allocation2 + $0x130] sm:$0xff] %v427
  %492 = vst [vmem:[#allocation2 + $0x138] sm:$0xff] %v428
  %493 = vst [vmem:[#allocation2 + $0x140] sm:$0xff] %v429
  %494 = vst [vmem:[#allocation2 + $0x148] sm:$0xff] %v430
  %495 = vst [vmem:[#allocation2 + $0x150] sm:$0xff] %v431
  %496 = vst [vmem:[#allocation2 + $0x158] sm:$0xff] %v432
  %497 = vst [vmem:[#allocation2 + $0x160] sm:$0xff] %v433
  %498 = vst [vmem:[#allocation2 + $0x168] sm:$0xff] %v434
  %499 = vst [vmem:[#allocation2 + $0x170] sm:$0xff] %v435
  %500 = vst [vmem:[#allocation2 + $0x178] sm:$0xff] %v436
  %501 = vst [vmem:[#allocation2 + $0x180] sm:$0xff] %v437
  %502 = vst [vmem:[#allocation2 + $0x188] sm:$0xff] %v438
  %503 = vst [vmem:[#allocation2 + $0x190] sm:$0xff] %v439
  %504 = vst [vmem:[#allocation2 + $0x198] sm:$0xff] %v440
  %505 = vst [vmem:[#allocation2 + $0x1a0] sm:$0xff] %v441
  %506 = vst [vmem:[#allocation2 + $0x1a8] sm:$0xff] %v442
  %507 = vst [vmem:[#allocation2 + $0x1b0] sm:$0xff] %v443
  %508 = vst [vmem:[#allocation2 + $0x1b8] sm:$0xff] %v444
  %509 = vst [vmem:[#allocation2 + $0x1c0] sm:$0xff] %v445
  %510 = vst [vmem:[#allocation2 + $0x1c8] sm:$0xff] %v446
  %511 = vst [vmem:[#allocation2 + $0x1d0] sm:$0xff] %v447
  %512 = vst [vmem:[#allocation2 + $0x1d8] sm:$0xff] %v448
  %513 = vst [vmem:[#allocation2 + $0x1e0] sm:$0xff] %v449
  %514 = vst [vmem:[#allocation2 + $0x1e8] sm:$0xff] %v450
  %515 = vst [vmem:[#allocation2 + $0x1f0] sm:$0xff] %v451
  %516 = vst [vmem:[#allocation2 + $0x1f8] sm:$0xff] %v452
  %v517 = vld [vmem:[#allocation2] sm:$0xff]
  %v518 = vld [vmem:[#allocation2 + $0x8] sm:$0xff]
  %v519 = vld [vmem:[#allocation2 + $0x10] sm:$0xff]
  %v520 = vld [vmem:[#allocation2 + $0x18] sm:$0xff]
  %v521 = vld [vmem:[#allocation2 + $0x20] sm:$0xff]
  %v522 = vld [vmem:[#allocation2 + $0x28] sm:$0xff]
  %v523 = vld [vmem:[#allocation2 + $0x30] sm:$0xff]
  %v524 = vld [vmem:[#allocation2 + $0x38] sm:$0xff]
  %v525 = vld [vmem:[#allocation2 + $0x40] sm:$0xff]
  %v526 = vld [vmem:[#allocation2 + $0x48] sm:$0xff]
  %v527 = vld [vmem:[#allocation2 + $0x50] sm:$0xff]
  %v528 = vld [vmem:[#allocation2 + $0x58] sm:$0xff]
  %v529 = vld [vmem:[#allocation2 + $0x60] sm:$0xff]
  %v530 = vld [vmem:[#allocation2 + $0x68] sm:$0xff]
  %v531 = vld [vmem:[#allocation2 + $0x70] sm:$0xff]
  %v532 = vld [vmem:[#allocation2 + $0x78] sm:$0xff]
  %v533 = vld [vmem:[#allocation2 + $0x80] sm:$0xff]
  %v534 = vld [vmem:[#allocation2 + $0x88] sm:$0xff]
  %v535 = vld [vmem:[#allocation2 + $0x90] sm:$0xff]
  %v536 = vld [vmem:[#allocation2 + $0x98] sm:$0xff]
  %v537 = vld [vmem:[#allocation2 + $0xa0] sm:$0xff]
  %v538 = vld [vmem:[#allocation2 + $0xa8] sm:$0xff]
  %v539 = vld [vmem:[#allocation2 + $0xb0] sm:$0xff]
  %v540 = vld [vmem:[#allocation2 + $0xb8] sm:$0xff]
  %v541 = vld [vmem:[#allocation2 + $0xc0] sm:$0xff]
  %v542 = vld [vmem:[#allocation2 + $0xc8] sm:$0xff]
  %v543 = vld [vmem:[#allocation2 + $0xd0] sm:$0xff]
  %v544 = vld [vmem:[#allocation2 + $0xd8] sm:$0xff]
  %v545 = vld [vmem:[#allocation2 + $0xe0] sm:$0xff]
  %v546 = vld [vmem:[#allocation2 + $0xe8] sm:$0xff]
  %v547 = vld [vmem:[#allocation2 + $0xf0] sm:$0xff]
  %v548 = vld [vmem:[#allocation2 + $0xf8] sm:$0xff]
  %v549 = vld [vmem:[#allocation2 + $0x100] sm:$0xff]
  %v550 = vld [vmem:[#allocation2 + $0x108] sm:$0xff]
  %v551 = vld [vmem:[#allocation2 + $0x110] sm:$0xff]
  %v552 = vld [vmem:[#allocation2 + $0x118] sm:$0xff]
  %v553 = vld [vmem:[#allocation2 + $0x120] sm:$0xff]
  %v554 = vld [vmem:[#allocation2 + $0x128] sm:$0xff]
  %v555 = vld [vmem:[#allocation2 + $0x130] sm:$0xff]
  %v556 = vld [vmem:[#allocation2 + $0x138] sm:$0xff]
  %v557 = vld [vmem:[#allocation2 + $0x140] sm:$0xff]
  %v558 = vld [vmem:[#allocation2 + $0x148] sm:$0xff]
  %v559 = vld [vmem:[#allocation2 + $0x150] sm:$0xff]
  %v560 = vld [vmem:[#allocation2 + $0x158] sm:$0xff]
  %v561 = vld [vmem:[#allocation2 + $0x160] sm:$0xff]
  %v562 = vld [vmem:[#allocation2 + $0x168] sm:$0xff]
  %v563 = vld [vmem:[#allocation2 + $0x170] sm:$0xff]
  %v564 = vld [vmem:[#allocation2 + $0x178] sm:$0xff]
  %v565 = vld [vmem:[#allocation2 + $0x180] sm:$0xff]
  %v566 = vld [vmem:[#allocation2 + $0x188] sm:$0xff]
  %v567 = vld [vmem:[#allocation2 + $0x190] sm:$0xff]
  %v568 = vld [vmem:[#allocation2 + $0x198] sm:$0xff]
  %v569 = vld [vmem:[#allocation2 + $0x1a0] sm:$0xff]
  %v570 = vld [vmem:[#allocation2 + $0x1a8] sm:$0xff]
  %v571 = vld [vmem:[#allocation2 + $0x1b0] sm:$0xff]
  %v572 = vld [vmem:[#allocation2 + $0x1b8] sm:$0xff]
  %v573 = vld [vmem:[#allocation2 + $0x1c0] sm:$0xff]
  %v574 = vld [vmem:[#allocation2 + $0x1c8] sm:$0xff]
  %v575 = vld [vmem:[#allocation2 + $0x1d0] sm:$0xff]
  %v576 = vld [vmem:[#allocation2 + $0x1d8] sm:$0xff]
  %v577 = vld [vmem:[#allocation2 + $0x1e0] sm:$0xff]
  %v578 = vld [vmem:[#allocation2 + $0x1e8] sm:$0xff]
  %v579 = vld [vmem:[#allocation2 + $0x1f0] sm:$0xff]
  %v580 = vld [vmem:[#allocation2 + $0x1f8] sm:$0xff]
  %v581 = vld [vmem:[%s3] sm:$0xff]
  %v582 = vld [vmem:[%s3 + $0x8] sm:$0xff]
  %v583 = vld [vmem:[%s3 + $0x10] sm:$0xff]
  %v584 = vld [vmem:[%s3 + $0x18] sm:$0xff]
  %v585 = vld [vmem:[%s3 + $0x20] sm:$0xff]
  %v586 = vld [vmem:[%s3 + $0x28] sm:$0xff]
  %v587 = vld [vmem:[%s3 + $0x30] sm:$0xff]
  %v588 = vld [vmem:[%s3 + $0x38] sm:$0xff]
  %v589 = vld [vmem:[%s3 + $0x40] sm:$0xff]
  %v590 = vld [vmem:[%s3 + $0x48] sm:$0xff]
  %v591 = vld [vmem:[%s3 + $0x50] sm:$0xff]
  %v592 = vld [vmem:[%s3 + $0x58] sm:$0xff]
  %v593 = vld [vmem:[%s3 + $0x60] sm:$0xff]
  %v594 = vld [vmem:[%s3 + $0x68] sm:$0xff]
  %v595 = vld [vmem:[%s3 + $0x70] sm:$0xff]
  %v596 = vld [vmem:[%s3 + $0x78] sm:$0xff]
  %v597 = vld [vmem:[%s3 + $0x80] sm:$0xff]
  %v598 = vld [vmem:[%s3 + $0x88] sm:$0xff]
  %v599 = vld [vmem:[%s3 + $0x90] sm:$0xff]
  %v600 = vld [vmem:[%s3 + $0x98] sm:$0xff]
  %v601 = vld [vmem:[%s3 + $0xa0] sm:$0xff]
  %v602 = vld [vmem:[%s3 + $0xa8] sm:$0xff]
  %v603 = vld [vmem:[%s3 + $0xb0] sm:$0xff]
  %v604 = vld [vmem:[%s3 + $0xb8] sm:$0xff]
  %v605 = vld [vmem:[%s3 + $0xc0] sm:$0xff]
  %v606 = vld [vmem:[%s3 + $0xc8] sm:$0xff]
  %v607 = vld [vmem:[%s3 + $0xd0] sm:$0xff]
  %v608 = vld [vmem:[%s3 + $0xd8] sm:$0xff]
  %v609 = vld [vmem:[%s3 + $0xe0] sm:$0xff]
  %v610 = vld [vmem:[%s3 + $0xe8] sm:$0xff]
  %v611 = vld [vmem:[%s3 + $0xf0] sm:$0xff]
  %v612 = vld [vmem:[%s3 + $0xf8] sm:$0xff]
  %v613 = vld [vmem:[%s4] sm:$0x1]
  %v615 = vperm.slane %v613, 0
  %617 = vmatpush.msra.mxu0 %v596
  %618 = vmatpush.msra.mxu0 %v595
  %619 = vmatpush.msra.mxu0 %v594
  %620 = vmatpush.msra.mxu0 %v593
  %621 = vmatpush.msra.mxu0 %v592
  %622 = vmatpush.msra.mxu0 %v591
  %623 = vmatpush.msra.mxu0 %v590
  %624 = vmatpush.msra.mxu0 %v589
  %625 = vmatpush.msra.mxu0 %v588
  %626 = vmatpush.msra.mxu0 %v587
  %627 = vmatpush.msra.mxu0 %v586
  %628 = vmatpush.msra.mxu0 %v585
  %629 = vmatpush.msra.mxu0 %v584
  %630 = vmatpush.msra.mxu0 %v583
  %631 = vmatpush.msra.mxu0 %v582
  %632 = vmatpush.msra.mxu0 %v581
  %633 = vmatmul.f32.gmra.mxu0 %v517
  %v634 = vpop.f32.mrf.mxu0
  %v635 = vadd.f32 %v615, %v634
  %636 = vmatmul.f32.gmra.mxu0 %v519
  %v637 = vpop.f32.mrf.mxu0
  %v638 = vadd.f32 %v615, %v637
  %639 = vmatmul.f32.gmra.mxu0 %v521
  %v640 = vpop.f32.mrf.mxu0
  %v641 = vadd.f32 %v615, %v640
  %642 = vmatmul.f32.gmra.mxu0 %v523
  %v643 = vpop.f32.mrf.mxu0
  %v644 = vadd.f32 %v615, %v643
  %645 = vmatmul.f32.gmra.mxu0 %v525
  %v646 = vpop.f32.mrf.mxu0
  %v647 = vadd.f32 %v615, %v646
  %648 = vmatmul.f32.gmra.mxu0 %v527
  %v649 = vpop.f32.mrf.mxu0
  %v650 = vadd.f32 %v615, %v649
  %651 = vmatmul.f32.gmra.mxu0 %v529
  %v652 = vpop.f32.mrf.mxu0
  %v653 = vadd.f32 %v615, %v652
  %654 = vmatmul.f32.gmra.mxu0 %v531
  %v655 = vpop.f32.mrf.mxu0
  %v656 = vadd.f32 %v615, %v655
  %657 = vmatmul.f32.gmra.mxu0 %v533
  %v658 = vpop.f32.mrf.mxu0
  %v659 = vadd.f32 %v615, %v658
  %660 = vmatmul.f32.gmra.mxu0 %v535
  %v661 = vpop.f32.mrf.mxu0
  %v662 = vadd.f32 %v615, %v661
  %663 = vmatmul.f32.gmra.mxu0 %v537
  %v664 = vpop.f32.mrf.mxu0
  %v665 = vadd.f32 %v615, %v664
  %666 = vmatmul.f32.gmra.mxu0 %v539
  %v667 = vpop.f32.mrf.mxu0
  %v668 = vadd.f32 %v615, %v667
  %669 = vmatmul.f32.gmra.mxu0 %v541
  %v670 = vpop.f32.mrf.mxu0
  %v671 = vadd.f32 %v615, %v670
  %672 = vmatmul.f32.gmra.mxu0 %v543
  %v673 = vpop.f32.mrf.mxu0
  %v674 = vadd.f32 %v615, %v673
  %675 = vmatmul.f32.gmra.mxu0 %v545
  %v676 = vpop.f32.mrf.mxu0
  %v677 = vadd.f32 %v615, %v676
  %678 = vmatmul.f32.gmra.mxu0 %v547
  %v679 = vpop.f32.mrf.mxu0
  %v680 = vadd.f32 %v615, %v679
  %681 = vmatmul.f32.gmra.mxu0 %v549
  %v682 = vpop.f32.mrf.mxu0
  %v683 = vadd.f32 %v615, %v682
  %684 = vmatmul.f32.gmra.mxu0 %v551
  %v685 = vpop.f32.mrf.mxu0
  %v686 = vadd.f32 %v615, %v685
  %687 = vmatmul.f32.gmra.mxu0 %v553
  %v688 = vpop.f32.mrf.mxu0
  %v689 = vadd.f32 %v615, %v688
  %690 = vmatmul.f32.gmra.mxu0 %v555
  %v691 = vpop.f32.mrf.mxu0
  %v692 = vadd.f32 %v615, %v691
  %693 = vmatmul.f32.gmra.mxu0 %v557
  %v694 = vpop.f32.mrf.mxu0
  %v695 = vadd.f32 %v615, %v694
  %696 = vmatmul.f32.gmra.mxu0 %v559
  %v697 = vpop.f32.mrf.mxu0
  %v698 = vadd.f32 %v615, %v697
  %699 = vmatmul.f32.gmra.mxu0 %v561
  %v700 = vpop.f32.mrf.mxu0
  %v701 = vadd.f32 %v615, %v700
  %702 = vmatmul.f32.gmra.mxu0 %v563
  %v703 = vpop.f32.mrf.mxu0
  %v704 = vadd.f32 %v615, %v703
  %705 = vmatmul.f32.gmra.mxu0 %v565
  %v706 = vpop.f32.mrf.mxu0
  %v707 = vadd.f32 %v615, %v706
  %708 = vmatmul.f32.gmra.mxu0 %v567
  %v709 = vpop.f32.mrf.mxu0
  %v710 = vadd.f32 %v615, %v709
  %711 = vmatmul.f32.gmra.mxu0 %v569
  %v712 = vpop.f32.mrf.mxu0
  %v713 = vadd.f32 %v615, %v712
  %714 = vmatmul.f32.gmra.mxu0 %v571
  %v715 = vpop.f32.mrf.mxu0
  %v716 = vadd.f32 %v615, %v715
  %717 = vmatmul.f32.gmra.mxu0 %v573
  %v718 = vpop.f32.mrf.mxu0
  %v719 = vadd.f32 %v615, %v718
  %720 = vmatmul.f32.gmra.mxu0 %v575
  %v721 = vpop.f32.mrf.mxu0
  %v722 = vadd.f32 %v615, %v721
  %723 = vmatmul.f32.gmra.mxu0 %v577
  %v724 = vpop.f32.mrf.mxu0
  %v725 = vadd.f32 %v615, %v724
  %726 = vmatmul.f32.gmra.mxu0 %v579
  %v727 = vpop.f32.mrf.mxu0
  %v728 = vadd.f32 %v615, %v727
  %729 = vdwg.mxu0
  %730 = vmatpush.msra.mxu0 %v612
  %731 = vmatpush.msra.mxu0 %v611
  %732 = vmatpush.msra.mxu0 %v610
  %733 = vmatpush.msra.mxu0 %v609
  %734 = vmatpush.msra.mxu0 %v608
  %735 = vmatpush.msra.mxu0 %v607
  %736 = vmatpush.msra.mxu0 %v606
  %737 = vmatpush.msra.mxu0 %v605
  %738 = vmatpush.msra.mxu0 %v604
  %739 = vmatpush.msra.mxu0 %v603
  %740 = vmatpush.msra.mxu0 %v602
  %741 = vmatpush.msra.mxu0 %v601
  %742 = vmatpush.msra.mxu0 %v600
  %743 = vmatpush.msra.mxu0 %v599
  %744 = vmatpush.msra.mxu0 %v598
  %745 = vmatpush.msra.mxu0 %v597
  %746 = vmatmul.f32.gmra.mxu0 %v518
  %v747 = vpop.f32.mrf.mxu0
  %v748 = vadd.f32 %v635, %v747
  %749 = vmatmul.f32.gmra.mxu0 %v520
  %v750 = vpop.f32.mrf.mxu0
  %v751 = vadd.f32 %v638, %v750
  %752 = vmatmul.f32.gmra.mxu0 %v522
  %v753 = vpop.f32.mrf.mxu0
  %v754 = vadd.f32 %v641, %v753
  %755 = vmatmul.f32.gmra.mxu0 %v524
  %v756 = vpop.f32.mrf.mxu0
  %v757 = vadd.f32 %v644, %v756
  %758 = vmatmul.f32.gmra.mxu0 %v526
  %v759 = vpop.f32.mrf.mxu0
  %v760 = vadd.f32 %v647, %v759
  %761 = vmatmul.f32.gmra.mxu0 %v528
  %v762 = vpop.f32.mrf.mxu0
  %v763 = vadd.f32 %v650, %v762
  %764 = vmatmul.f32.gmra.mxu0 %v530
  %v765 = vpop.f32.mrf.mxu0
  %v766 = vadd.f32 %v653, %v765
  %767 = vmatmul.f32.gmra.mxu0 %v532
  %v768 = vpop.f32.mrf.mxu0
  %v769 = vadd.f32 %v656, %v768
  %770 = vmatmul.f32.gmra.mxu0 %v534
  %v771 = vpop.f32.mrf.mxu0
  %v772 = vadd.f32 %v659, %v771
  %773 = vmatmul.f32.gmra.mxu0 %v536
  %v774 = vpop.f32.mrf.mxu0
  %v775 = vadd.f32 %v662, %v774
  %776 = vmatmul.f32.gmra.mxu0 %v538
  %v777 = vpop.f32.mrf.mxu0
  %v778 = vadd.f32 %v665, %v777
  %779 = vmatmul.f32.gmra.mxu0 %v540
  %v780 = vpop.f32.mrf.mxu0
  %v781 = vadd.f32 %v668, %v780
  %782 = vmatmul.f32.gmra.mxu0 %v542
  %v783 = vpop.f32.mrf.mxu0
  %v784 = vadd.f32 %v671, %v783
  %785 = vmatmul.f32.gmra.mxu0 %v544
  %v786 = vpop.f32.mrf.mxu0
  %v787 = vadd.f32 %v674, %v786
  %788 = vmatmul.f32.gmra.mxu0 %v546
  %v789 = vpop.f32.mrf.mxu0
  %v790 = vadd.f32 %v677, %v789
  %791 = vmatmul.f32.gmra.mxu0 %v548
  %v792 = vpop.f32.mrf.mxu0
  %v793 = vadd.f32 %v680, %v792
  %794 = vmatmul.f32.gmra.mxu0 %v550
  %v795 = vpop.f32.mrf.mxu0
  %v796 = vadd.f32 %v683, %v795
  %797 = vmatmul.f32.gmra.mxu0 %v552
  %v798 = vpop.f32.mrf.mxu0
  %v799 = vadd.f32 %v686, %v798
  %800 = vmatmul.f32.gmra.mxu0 %v554
  %v801 = vpop.f32.mrf.mxu0
  %v802 = vadd.f32 %v689, %v801
  %803 = vmatmul.f32.gmra.mxu0 %v556
  %v804 = vpop.f32.mrf.mxu0
  %v805 = vadd.f32 %v692, %v804
  %806 = vmatmul.f32.gmra.mxu0 %v558
  %v807 = vpop.f32.mrf.mxu0
  %v808 = vadd.f32 %v695, %v807
  %809 = vmatmul.f32.gmra.mxu0 %v560
  %v810 = vpop.f32.mrf.mxu0
  %v811 = vadd.f32 %v698, %v810
  %812 = vmatmul.f32.gmra.mxu0 %v562
  %v813 = vpop.f32.mrf.mxu0
  %v814 = vadd.f32 %v701, %v813
  %815 = vmatmul.f32.gmra.mxu0 %v564
  %v816 = vpop.f32.mrf.mxu0
  %v817 = vadd.f32 %v704, %v816
  %818 = vmatmul.f32.gmra.mxu0 %v566
  %v819 = vpop.f32.mrf.mxu0
  %v820 = vadd.f32 %v707, %v819
  %821 = vmatmul.f32.gmra.mxu0 %v568
  %v822 = vpop.f32.mrf.mxu0
  %v823 = vadd.f32 %v710, %v822
  %824 = vmatmul.f32.gmra.mxu0 %v570
  %v825 = vpop.f32.mrf.mxu0
  %v826 = vadd.f32 %v713, %v825
  %827 = vmatmul.f32.gmra.mxu0 %v572
  %v828 = vpop.f32.mrf.mxu0
  %v829 = vadd.f32 %v716, %v828
  %830 = vmatmul.f32.gmra.mxu0 %v574
  %v831 = vpop.f32.mrf.mxu0
  %v832 = vadd.f32 %v719, %v831
  %833 = vmatmul.f32.gmra.mxu0 %v576
  %v834 = vpop.f32.mrf.mxu0
  %v835 = vadd.f32 %v722, %v834
  %836 = vmatmul.f32.gmra.mxu0 %v578
  %v837 = vpop.f32.mrf.mxu0
  %v838 = vadd.f32 %v725, %v837
  %839 = vmatmul.f32.gmra.mxu0 %v580
  %v840 = vpop.f32.mrf.mxu0
  %v841 = vadd.f32 %v728, %v840
  %842 = vdwg.mxu0
  %843 = vst [vmem:[%s5] sm:$0xff] %v748
  %844 = vst [vmem:[%s5 + $0x8] sm:$0xff] %v751
  %845 = vst [vmem:[%s5 + $0x10] sm:$0xff] %v754
  %846 = vst [vmem:[%s5 + $0x18] sm:$0xff] %v757
  %847 = vst [vmem:[%s5 + $0x20] sm:$0xff] %v760
  %848 = vst [vmem:[%s5 + $0x28] sm:$0xff] %v763
  %849 = vst [vmem:[%s5 + $0x30] sm:$0xff] %v766
  %850 = vst [vmem:[%s5 + $0x38] sm:$0xff] %v769
  %851 = vst [vmem:[%s5 + $0x40] sm:$0xff] %v772
  %852 = vst [vmem:[%s5 + $0x48] sm:$0xff] %v775
  %853 = vst [vmem:[%s5 + $0x50] sm:$0xff] %v778
  %854 = vst [vmem:[%s5 + $0x58] sm:$0xff] %v781
  %855 = vst [vmem:[%s5 + $0x60] sm:$0xff] %v784
  %856 = vst [vmem:[%s5 + $0x68] sm:$0xff] %v787
  %857 = vst [vmem:[%s5 + $0x70] sm:$0xff] %v790
  %858 = vst [vmem:[%s5 + $0x78] sm:$0xff] %v793
  %859 = vst [vmem:[%s5 + $0x80] sm:$0xff] %v796
  %860 = vst [vmem:[%s5 + $0x88] sm:$0xff] %v799
  %861 = vst [vmem:[%s5 + $0x90] sm:$0xff] %v802
  %862 = vst [vmem:[%s5 + $0x98] sm:$0xff] %v805
  %863 = vst [vmem:[%s5 + $0xa0] sm:$0xff] %v808
  %864 = vst [vmem:[%s5 + $0xa8] sm:$0xff] %v811
  %865 = vst [vmem:[%s5 + $0xb0] sm:$0xff] %v814
  %866 = vst [vmem:[%s5 + $0xb8] sm:$0xff] %v817
  %867 = vst [vmem:[%s5 + $0xc0] sm:$0xff] %v820
  %868 = vst [vmem:[%s5 + $0xc8] sm:$0xff] %v823
  %869 = vst [vmem:[%s5 + $0xd0] sm:$0xff] %v826
  %870 = vst [vmem:[%s5 + $0xd8] sm:$0xff] %v829
  %871 = vst [vmem:[%s5 + $0xe0] sm:$0xff] %v832
  %872 = vst [vmem:[%s5 + $0xe8] sm:$0xff] %v835
  %873 = vst [vmem:[%s5 + $0xf0] sm:$0xff] %v838
  %874 = vst [vmem:[%s5 + $0xf8] sm:$0xff] %v841
  // Predicated region
  $region22: #{mlp_forward.1} parent=0 // pred_check
    _
  $region23: #{mlp_forward.1} parent=0 // pred_check_branch
    %876 = sbr.rel (0) target = $region25
  $region24: #{mlp_forward.1} parent=0 // pred_region
    _
  $region25: #{mlp_forward.1} parent=0 // pred_fallthru
    _
  // Predicated region
  $region26: #{mlp_forward.1} parent=0 // pred_check
    _
  $region27: #{mlp_forward.1} parent=0 // pred_check_branch
    %878 = sbr.rel (0) target = $region29
  $region28: #{mlp_forward.1} parent=0 // pred_region
    _
  $region29: #{mlp_forward.1} parent=0 // pred_fallthru
    _

</llo_original>
